<compile_context>
chip_gen: v7x
topology: tpu7x:2x2x1
jax: 0.10.0
libtpu: 0.0.40
codegen_flags: <defaults>
</compile_context>

<pallas_src>
import math

import jax
import jax.numpy as jnp
from jax.experimental import pallas as pl
from jax.experimental.pallas import tpu as pltpu

# ---------------- config (small shapes consistent with PPNet.__init__) ----------------
OUTER_BATCH = 2      # x.shape[0] in PPNet.forward
SUB_BATCH   = 20     # sub_batch_size; 20 matches prototype_class_identity.repeat((20, 1))
C_IN        = 1
L_IN        = 16
F_CH        = 8      # backbone out channels == last BatchNorm1d.num_features
NUM_PROTO   = 6      # prototype_shape[0]  (divisible by NUM_CLASSES)
P_CH        = 8      # prototype_shape[1]
PROTO_LEN   = 1      # prototype_shape[2]
NUM_CLASSES = 2
EPSILON     = 1e-4
INCORRECT_STRENGTH = -0.5
BN_EPS      = 1e-5

SLOT    = 8                       # lane slot width per length position (== F_CH == P_CH)
LF      = L_IN * SLOT             # 128 packed lanes: lane = l*SLOT + channel/prototype
B_TOTAL = OUTER_BATCH * SUB_BATCH

assert F_CH == SLOT and P_CH == SLOT and NUM_PROTO <= SLOT
assert (L_IN & (L_IN - 1)) == 0          # power-of-two length (roll-min reduction)
assert LF == 128                          # exactly one lane tile -> fully lane-dense
assert C_IN == 1

# packed-weight slab row offsets (tile-aligned where it matters)
ROW_KB   = 0                              # rows 0 : L_IN+2     banded conv-as-matmul matrix
ROW_VEC  = 24                             # rows 24..28         scale / bfold / b1 / b2 / p2
ROW_W1   = 32                             # block-diag 1x1 conv #1
ROW_W2   = ROW_W1 + LF                    # block-diag 1x1 conv #2
ROW_PT   = ROW_W2 + LF                    # block-diag prototype weights
ROW_ONES = ROW_PT + LF                    # block-diag ones (per-slot ||z||^2 sum)
ROW_LW   = ROW_ONES + LF                  # per-row last-layer weights, NUM_CLASSES * B rows
ROW_IND  = ROW_LW + NUM_CLASSES * B_TOTAL  # outer-batch indicator (OB, B)
SLAB_ROWS = ((ROW_IND + OUTER_BATCH + 7) // 8) * 8


# ---------------- Pallas kernel (whole forward, single grid step) ----------------
def ppnet_fused_kernel(xpad_ref, wslab_ref, logits_ref, mind_ref):
    f32 = jnp.float32
    x = xpad_ref[...]                                              # (B, L+2)

    kb       = wslab_ref[ROW_KB:ROW_KB + L_IN + 2, :]              # (L+2, 128)
    scale_b  = wslab_ref[ROW_VEC + 0:ROW_VEC + 1, :]               # (1, 128) folded BN scale
    bfold_b  = wslab_ref[ROW_VEC + 1:ROW_VEC + 2, :]               # (1, 128) folded conv-bias + BN shift
    b1_b     = wslab_ref[ROW_VEC + 2:ROW_VEC + 3, :]
    b2_b     = wslab_ref[ROW_VEC + 3:ROW_VEC + 4, :]
    p2_b     = wslab_ref[ROW_VEC + 4:ROW_VEC + 5, :]
    w1_big   = wslab_ref[ROW_W1:ROW_W1 + LF, :]                    # (128, 128) block-diag
    w2_big   = wslab_ref[ROW_W2:ROW_W2 + LF, :]
    pt_big   = wslab_ref[ROW_PT:ROW_PT + LF, :]
    ones_big = wslab_ref[ROW_ONES:ROW_ONES + LF, :]
    ind      = wslab_ref[ROW_IND:ROW_IND + OUTER_BATCH, 0:B_TOTAL]  # (OB, B) outer-batch indicator

    # backbone Conv1d(k=3, pad=1) + folded BatchNorm (eval) + ReLU.
    # In-kernel im2col: the banded kb matrix maps (B, L+2) -> (B, L*F_CH) packed lanes.
    h = jnp.dot(x, kb, preferred_element_type=f32)
    h = jnp.maximum(h * scale_b + bfold_b, 0.0)

    # add_on_layers: 1x1 conv -> ReLU -> 1x1 conv -> Sigmoid (block-diagonal weights keep the
    # (l, channel) lane packing, so these stay plain 2D lane-dense matmuls).
    a = jnp.maximum(jnp.dot(h, w1_big, preferred_element_type=f32) + b1_b, 0.0)
    z = jax.nn.sigmoid(jnp.dot(a, w2_big, preferred_element_type=f32) + b2_b)

    # _l2_convolution per (l, prototype) lane slot:
    #   d = relu( ||z_l||^2 - 2 * z_l . p_j + ||p_j||^2 )
    x2s = jnp.dot(z * z, ones_big, preferred_element_type=f32)     # per-slot sum, broadcast in-slot
    xp  = jnp.dot(z, pt_big, preferred_element_type=f32)
    d = jnp.maximum(x2s - 2.0 * xp + p2_b, 0.0)                    # (B, 128), lane = l*8 + j

    # min over length (== -max_pool1d(-dist, L)): stride-8 lane reduction via roll + minimum.
    m = d
    for k in range(L_IN.bit_length() - 1):                         # shifts 8, 16, 32, 64
        m = jnp.minimum(m, pltpu.roll(m, shift=SLOT * (1 << k), axis=1))
    mind_ref[...] = m                                              # lanes 0:NUM_PROTO hold the mins

    # distance_2_similarity ('log') + fused bias-free last layer.
    act = jnp.log((m + 1.0) / (m + EPSILON))
    for c in range(NUM_CLASSES):
        lw_c = wslab_ref[ROW_LW + c * B_TOTAL:ROW_LW + (c + 1) * B_TOTAL, :]   # (B, 128), 0 beyond NP
        contrib = jnp.dot(ind, act * lw_c, preferred_element_type=f32)         # (OB, 128)
        logits_ref[:, c:c + 1] = jnp.sum(contrib, axis=1, keepdims=True)


# ---------------- parameter construction (deterministic, synthetic) ----------------
def build_weight_slab(p, last_w):
    f32 = jnp.float32
    # banded conv-as-matmul matrix: kb[m, l*SLOT + f] = wb[m - l, f] for 0 <= m - l < 3
    m_idx = jnp.arange(L_IN + 2)[:, None]
    l_idx = jnp.arange(L_IN)[None, :]
    t_idx = m_idx - l_idx
    valid = (t_idx >= 0) & (t_idx < 3)
    kb3 = jnp.where(valid[:, :, None], p['wb'][jnp.clip(t_idx, 0, 2)], 0.0)   # (L+2, L, F_CH)
    kb = kb3.reshape(L_IN + 2, LF)

    eye = jnp.eye(L_IN, dtype=f32)
    w1_big = jnp.kron(eye, p['w1k'])                                # (128, 128)
    w2_big = jnp.kron(eye, p['w2k'])
    pt_pad = jnp.zeros((P_CH, SLOT), f32).at[:, :NUM_PROTO].set(p['protoT'])
    pt_big = jnp.kron(eye, pt_pad)
    ones_big = jnp.kron(eye, jnp.ones((SLOT, SLOT), f32))

    scale_b = jnp.tile(p['scale'], L_IN)
    bfold_b = jnp.tile(p['bfold'], L_IN)
    b1_b = jnp.tile(p['b1'], L_IN)
    b2_b = jnp.tile(p['b2'], L_IN)
    p2_slot = jnp.zeros((SLOT,), f32).at[:NUM_PROTO].set(p['p2'])
    p2_b = jnp.tile(p2_slot, L_IN)

    # per-row last-layer weights: row r (= ob*SB + sb) of class c holds last_w[c, sb*NP + j] in lane j
    lw3 = last_w.reshape(NUM_CLASSES, SUB_BATCH, NUM_PROTO)
    lw_rows = jnp.zeros((NUM_CLASSES * B_TOTAL, LF), f32)
    for c in range(NUM_CLASSES):
        blk = jnp.tile(lw3[c], (OUTER_BATCH, 1))                    # (B, NP)
        lw_rows = lw_rows.at[c * B_TOTAL:(c + 1) * B_TOTAL, :NUM_PROTO].set(blk)

    ind = (jnp.arange(B_TOTAL)[None, :] // SUB_BATCH
           == jnp.arange(OUTER_BATCH)[:, None]).astype(f32)         # (OB, B)

    slab = jnp.zeros((SLAB_ROWS, LF), f32)
    slab = slab.at[ROW_KB:ROW_KB + L_IN + 2, :].set(kb)
    slab = slab.at[ROW_VEC + 0, :].set(scale_b)
    slab = slab.at[ROW_VEC + 1, :].set(bfold_b)
    slab = slab.at[ROW_VEC + 2, :].set(b1_b)
    slab = slab.at[ROW_VEC + 3, :].set(b2_b)
    slab = slab.at[ROW_VEC + 4, :].set(p2_b)
    slab = slab.at[ROW_W1:ROW_W1 + LF, :].set(w1_big)
    slab = slab.at[ROW_W2:ROW_W2 + LF, :].set(w2_big)
    slab = slab.at[ROW_PT:ROW_PT + LF, :].set(pt_big)
    slab = slab.at[ROW_ONES:ROW_ONES + LF, :].set(ones_big)
    slab = slab.at[ROW_LW:ROW_LW + NUM_CLASSES * B_TOTAL, :].set(lw_rows)
    slab = slab.at[ROW_IND:ROW_IND + OUTER_BATCH, :B_TOTAL].set(ind)
    return slab


def init_params(key):
    ks = jax.random.split(key, 8)

    # backbone conv1d(C_IN -> F_CH, k=3) + BN(F_CH) eval stats (folded)
    fan_in = C_IN * 3
    conv_w = jax.random.normal(ks[0], (F_CH, C_IN, 3), jnp.float32) / math.sqrt(fan_in)
    conv_b = jax.random.normal(ks[1], (F_CH,), jnp.float32) * 0.05
    bn_gamma = jnp.ones((F_CH,), jnp.float32)
    bn_beta = jnp.zeros((F_CH,), jnp.float32)
    bn_mean = jax.random.normal(ks[2], (F_CH,), jnp.float32) * 0.1
    bn_var = 1.0 + jax.random.uniform(ks[3], (F_CH,), jnp.float32) * 0.1
    scale = bn_gamma / jnp.sqrt(bn_var + BN_EPS)                 # folded BN scale
    bfold = (conv_b - bn_mean) * scale + bn_beta                 # folded conv-bias + BN shift
    wb = jnp.transpose(conv_w[:, 0, :], (1, 0))                  # (3, F_CH): wb[t, f] = conv_w[f, 0, t]

    # add_on_layers (kaiming_normal fan_out/relu, zero bias)
    std = math.sqrt(2.0 / (P_CH * 1))
    w1 = jax.random.normal(ks[4], (P_CH, F_CH), jnp.float32) * std   # torch (out, in, 1) squeezed
    w2 = jax.random.normal(ks[5], (P_CH, P_CH), jnp.float32) * std
    b1 = jnp.zeros((P_CH,), jnp.float32)
    b2 = jnp.zeros((P_CH,), jnp.float32)

    # prototype_vectors = torch.rand(prototype_shape)
    protos = jax.random.uniform(ks[6], (NUM_PROTO, P_CH, PROTO_LEN), jnp.float32)
    protoT = protos[:, :, 0].T                                   # (P_CH, NP)
    p2 = jnp.sum(protos ** 2, axis=(1, 2))                       # (NP,)

    # last_layer weight via set_last_layer_incorrect_connection (average_linear=False)
    npc = NUM_PROTO // NUM_CLASSES
    ident = jnp.zeros((NUM_PROTO, NUM_CLASSES), jnp.float32)
    ident = ident.at[jnp.arange(NUM_PROTO), jnp.arange(NUM_PROTO) // npc].set(1.0)
    ident_rep = jnp.tile(ident, (SUB_BATCH, 1))                  # prototype_class_identity.repeat((20, 1))
    pos = ident_rep.T                                            # (NC, SB*NP)
    last_w = 1.0 * pos + INCORRECT_STRENGTH * (1.0 - pos)
    last_wT = last_w.T                                           # (SB*NP, NC)

    p = dict(wb=wb, scale=scale, bfold=bfold, w1k=w1.T, b1=b1, w2k=w2.T, b2=b2,
             protoT=protoT, p2=p2, last_wT=last_wT)
    p['wslab'] = build_weight_slab(p, last_w)
    return p


# ---------------- wrapper (glue: padding, output slicing) ----------------
@jax.jit
def ppnet_forward(x, p):
    """x: (OUTER_BATCH, SUB_BATCH, C_IN, L_IN) like PyTorch's x where x[i] is one NCL batch.
    Returns (logits (OB, NUM_CLASSES), min_distances (OB, SUB_BATCH*NUM_PROTO))."""
    OB, SB, C, L = x.shape
    B = OB * SB
    xpad = jnp.pad(x.reshape(B, L), ((0, 0), (1, 1)))            # (B, L+2); no im2col / duplication
    wslab = p['wslab']

    logits, mind_pad = pl.pallas_call(
        ppnet_fused_kernel,
        out_shape=(jax.ShapeDtypeStruct((OB, NUM_CLASSES), jnp.float32),
                   jax.ShapeDtypeStruct((B, LF), jnp.float32)),
        grid=(1,),
        in_specs=[pl.BlockSpec((B, L + 2), lambda i: (0, 0)),
                  pl.BlockSpec(wslab.shape, lambda i: (0, 0))],
        out_specs=(pl.BlockSpec((OB, NUM_CLASSES), lambda i: (0, 0)),
                   pl.BlockSpec((B, LF), lambda i: (0, 0))),
        compiler_params=pltpu.CompilerParams(dimension_semantics=("arbitrary",)),
    )(xpad, wslab)

    min_dists = mind_pad[:, :NUM_PROTO].reshape(OB, SB * NUM_PROTO)  # min_distances.view(OB, -1)
    return logits, min_dists


# ---------------- plain-JAX reference (numerical sanity check) ----------------
def reference_forward(x, p):
    OB, SB, C, L = x.shape
    B = OB * SB
    xs = x.reshape(B, L)                                          # C_IN == 1
    xpad = jnp.pad(xs, ((0, 0), (1, 1)))
    h = sum(xpad[:, t:t + L, None] * p['wb'][t][None, None, :] for t in range(3))
    h = jnp.maximum(h * p['scale'] + p['bfold'], 0.0)
    a = jnp.maximum(jnp.einsum('blf,fp->blp', h, p['w1k']) + p['b1'], 0.0)
    z = jax.nn.sigmoid(jnp.einsum('blp,pq->blq', a, p['w2k']) + p['b2'])
    x2s = jnp.sum(z * z, axis=-1, keepdims=True)
    xp = jnp.einsum('blq,qn->bln', z, p['protoT'])
    d = jnp.maximum(x2s - 2.0 * xp + p['p2'][None, None, :], 0.0)
    mind = jnp.min(d, axis=1)
    act = jnp.log((mind + 1.0) / (mind + EPSILON))
    logits = act.reshape(OB, SB * NUM_PROTO) @ p['last_wT']
    return logits, mind.reshape(OB, SB * NUM_PROTO)


if __name__ == "__main__":
    key = jax.random.PRNGKey(0)
    pkey, xkey = jax.random.split(key)
    params = init_params(pkey)
    x = jax.random.normal(xkey, (OUTER_BATCH, SUB_BATCH, C_IN, L_IN), jnp.float32)

    logits, min_dists = ppnet_forward(x, params)
    jax.block_until_ready((logits, min_dists))

    ref_logits, ref_min = reference_forward(x, params)
    assert logits.shape == (OUTER_BATCH, NUM_CLASSES)
    assert min_dists.shape == (OUTER_BATCH, SUB_BATCH * NUM_PROTO)
    assert jnp.allclose(logits, ref_logits, atol=1e-4, rtol=1e-4)
    assert jnp.allclose(min_dists, ref_min, atol=1e-5, rtol=1e-4)
    print("KERNEL_OK")
</pallas_src>

<mosaic_0001>
module attributes {stable_mosaic.version = 11 : i64} {
  func.func @ppnet_fused_kernel(%arg0: i32, %arg1: memref<40x18xf32, #tpu.memory_space<vmem>>, %arg2: memref<632x128xf32, #tpu.memory_space<vmem>>, %arg3: memref<2x2xf32, #tpu.memory_space<vmem>>, %arg4: memref<40x128xf32, #tpu.memory_space<vmem>>) attributes {dimension_semantics = [#tpu.dimension_semantics<arbitrary>], iteration_bounds = array<i64: 1>, scalar_prefetch = 0 : i64, scratch_operands = 0 : i64, tpu.core_type = #tpu.core_type<tc>, window_params = [{pipeline_mode = #tpu.pipeline_mode<synchronous>, transform_indices = @transform_0, window_bounds = array<i64: 40, 18>}, {pipeline_mode = #tpu.pipeline_mode<synchronous>, transform_indices = @transform_1, window_bounds = array<i64: 632, 128>}, {pipeline_mode = #tpu.pipeline_mode<synchronous>, transform_indices = @transform_2, window_bounds = array<i64: 2, 2>}, {pipeline_mode = #tpu.pipeline_mode<synchronous>, transform_indices = @transform_3, window_bounds = array<i64: 40, 128>}]} {
    %c0 = arith.constant 0 : index
    %c0_0 = arith.constant 0 : index
    %0 = vector.load %arg1[%c0, %c0_0] : memref<40x18xf32, #tpu.memory_space<vmem>>, vector<40x18xf32>
    %c0_1 = arith.constant 0 : index
    %c0_2 = arith.constant 0 : index
    %1 = vector.load %arg2[%c0_1, %c0_2] : memref<632x128xf32, #tpu.memory_space<vmem>>, vector<18x128xf32>
    %c24 = arith.constant 24 : index
    %c0_3 = arith.constant 0 : index
    %2 = vector.load %arg2[%c24, %c0_3] : memref<632x128xf32, #tpu.memory_space<vmem>>, vector<1x128xf32>
    %c25 = arith.constant 25 : index
    %c0_4 = arith.constant 0 : index
    %3 = vector.load %arg2[%c25, %c0_4] : memref<632x128xf32, #tpu.memory_space<vmem>>, vector<1x128xf32>
    %c26 = arith.constant 26 : index
    %c0_5 = arith.constant 0 : index
    %4 = vector.load %arg2[%c26, %c0_5] : memref<632x128xf32, #tpu.memory_space<vmem>>, vector<1x128xf32>
    %c27 = arith.constant 27 : index
    %c0_6 = arith.constant 0 : index
    %5 = vector.load %arg2[%c27, %c0_6] : memref<632x128xf32, #tpu.memory_space<vmem>>, vector<1x128xf32>
    %c28 = arith.constant 28 : index
    %c0_7 = arith.constant 0 : index
    %6 = vector.load %arg2[%c28, %c0_7] : memref<632x128xf32, #tpu.memory_space<vmem>>, vector<1x128xf32>
    %c32 = arith.constant 32 : index
    %c0_8 = arith.constant 0 : index
    %7 = vector.load %arg2[%c32, %c0_8] : memref<632x128xf32, #tpu.memory_space<vmem>>, vector<128x128xf32>
    %c160 = arith.constant 160 : index
    %c0_9 = arith.constant 0 : index
    %8 = vector.load %arg2[%c160, %c0_9] : memref<632x128xf32, #tpu.memory_space<vmem>>, vector<128x128xf32>
    %c288 = arith.constant 288 : index
    %c0_10 = arith.constant 0 : index
    %9 = vector.load %arg2[%c288, %c0_10] : memref<632x128xf32, #tpu.memory_space<vmem>>, vector<128x128xf32>
    %c416 = arith.constant 416 : index
    %c0_11 = arith.constant 0 : index
    %10 = vector.load %arg2[%c416, %c0_11] : memref<632x128xf32, #tpu.memory_space<vmem>>, vector<128x128xf32>
    %c624 = arith.constant 624 : index
    %c0_12 = arith.constant 0 : index
    %11 = vector.load %arg2[%c624, %c0_12] : memref<632x128xf32, #tpu.memory_space<vmem>>, vector<2x40xf32>
    %cst = arith.constant dense<0.000000e+00> : vector<40x128xf32>
    %12 = tpu.matmul %0, %1, %cst {dimension_numbers = #tpu.dot_dimension_numbers<[1], [0], [0], [1], [0, 0, 1, 1], [], []>} : vector<40x18xf32>, vector<18x128xf32>, vector<40x128xf32> -> vector<40x128xf32>
    %13 = vector.broadcast %2 : vector<1x128xf32> to vector<40x128xf32>
    %14 = arith.mulf %12, %13 : vector<40x128xf32>
    %15 = vector.broadcast %3 : vector<1x128xf32> to vector<40x128xf32>
    %16 = arith.addf %14, %15 : vector<40x128xf32>
    %cst_13 = arith.constant 0.000000e+00 : f32
    %17 = vector.broadcast %cst_13 : f32 to vector<40x128xf32>
    %18 = arith.maximumf %16, %17 : vector<40x128xf32>
    %cst_14 = arith.constant dense<0.000000e+00> : vector<40x128xf32>
    %19 = tpu.matmul %18, %7, %cst_14 {dimension_numbers = #tpu.dot_dimension_numbers<[1], [0], [0], [1], [0, 0, 1, 1], [], []>} : vector<40x128xf32>, vector<128x128xf32>, vector<40x128xf32> -> vector<40x128xf32>
    %20 = vector.broadcast %4 : vector<1x128xf32> to vector<40x128xf32>
    %21 = arith.addf %19, %20 : vector<40x128xf32>
    %cst_15 = arith.constant 0.000000e+00 : f32
    %22 = vector.broadcast %cst_15 : f32 to vector<40x128xf32>
    %23 = arith.maximumf %21, %22 : vector<40x128xf32>
    %cst_16 = arith.constant dense<0.000000e+00> : vector<40x128xf32>
    %24 = tpu.matmul %23, %8, %cst_16 {dimension_numbers = #tpu.dot_dimension_numbers<[1], [0], [0], [1], [0, 0, 1, 1], [], []>} : vector<40x128xf32>, vector<128x128xf32>, vector<40x128xf32> -> vector<40x128xf32>
    %25 = vector.broadcast %5 : vector<1x128xf32> to vector<40x128xf32>
    %26 = arith.addf %24, %25 : vector<40x128xf32>
    %27 = arith.negf %26 : vector<40x128xf32>
    %28 = math.exp %27 : vector<40x128xf32>
    %cst_17 = arith.constant 1.000000e+00 : f32
    %29 = vector.broadcast %cst_17 : f32 to vector<40x128xf32>
    %30 = arith.addf %29, %28 : vector<40x128xf32>
    %31 = arith.divf %29, %30 : vector<40x128xf32>
    %32 = arith.mulf %31, %31 : vector<40x128xf32>
    %cst_18 = arith.constant dense<0.000000e+00> : vector<40x128xf32>
    %33 = tpu.matmul %32, %10, %cst_18 {dimension_numbers = #tpu.dot_dimension_numbers<[1], [0], [0], [1], [0, 0, 1, 1], [], []>} : vector<40x128xf32>, vector<128x128xf32>, vector<40x128xf32> -> vector<40x128xf32>
    %cst_19 = arith.constant dense<0.000000e+00> : vector<40x128xf32>
    %34 = tpu.matmul %31, %9, %cst_19 {dimension_numbers = #tpu.dot_dimension_numbers<[1], [0], [0], [1], [0, 0, 1, 1], [], []>} : vector<40x128xf32>, vector<128x128xf32>, vector<40x128xf32> -> vector<40x128xf32>
    %cst_20 = arith.constant 2.000000e+00 : f32
    %35 = vector.broadcast %cst_20 : f32 to vector<40x128xf32>
    %36 = arith.mulf %35, %34 : vector<40x128xf32>
    %37 = arith.subf %33, %36 : vector<40x128xf32>
    %38 = vector.broadcast %6 : vector<1x128xf32> to vector<40x128xf32>
    %39 = arith.addf %37, %38 : vector<40x128xf32>
    %cst_21 = arith.constant 0.000000e+00 : f32
    %40 = vector.broadcast %cst_21 : f32 to vector<40x128xf32>
    %41 = arith.maximumf %39, %40 : vector<40x128xf32>
    %c8_i32 = arith.constant 8 : i32
    %42 = tpu.dynamic_rotate %41 by %c8_i32 dim 1 : vector<40x128xf32>, i32 -> vector<40x128xf32>
    %43 = arith.minimumf %41, %42 : vector<40x128xf32>
    %c16_i32 = arith.constant 16 : i32
    %44 = tpu.dynamic_rotate %43 by %c16_i32 dim 1 : vector<40x128xf32>, i32 -> vector<40x128xf32>
    %45 = arith.minimumf %43, %44 : vector<40x128xf32>
    %c32_i32 = arith.constant 32 : i32
    %46 = tpu.dynamic_rotate %45 by %c32_i32 dim 1 : vector<40x128xf32>, i32 -> vector<40x128xf32>
    %47 = arith.minimumf %45, %46 : vector<40x128xf32>
    %c64_i32 = arith.constant 64 : i32
    %48 = tpu.dynamic_rotate %47 by %c64_i32 dim 1 : vector<40x128xf32>, i32 -> vector<40x128xf32>
    %49 = arith.minimumf %47, %48 : vector<40x128xf32>
    %c0_22 = arith.constant 0 : index
    %c0_23 = arith.constant 0 : index
    %50 = vector.load %arg4[%c0_22, %c0_23] : memref<40x128xf32, #tpu.memory_space<vmem>>, vector<40x128xf32>
    tpu.vector_store %arg4[%c0_22, %c0_23], %49 {strides = array<i32>} : memref<40x128xf32, #tpu.memory_space<vmem>>, vector<40x128xf32>,
    %cst_24 = arith.constant 1.000000e+00 : f32
    %51 = vector.broadcast %cst_24 : f32 to vector<40x128xf32>
    %52 = arith.addf %49, %51 : vector<40x128xf32>
    %cst_25 = arith.constant 9.99999974E-5 : f32
    %53 = vector.broadcast %cst_25 : f32 to vector<40x128xf32>
    %54 = arith.addf %49, %53 : vector<40x128xf32>
    %55 = arith.divf %52, %54 : vector<40x128xf32>
    %56 = math.log %55 : vector<40x128xf32>
    %c544 = arith.constant 544 : index
    %c0_26 = arith.constant 0 : index
    %57 = vector.load %arg2[%c544, %c0_26] : memref<632x128xf32, #tpu.memory_space<vmem>>, vector<40x128xf32>
    %58 = arith.mulf %56, %57 : vector<40x128xf32>
    %cst_27 = arith.constant dense<0.000000e+00> : vector<2x128xf32>
    %59 = tpu.matmul %11, %58, %cst_27 {dimension_numbers = #tpu.dot_dimension_numbers<[1], [0], [0], [1], [0, 0, 1, 1], [], []>} : vector<2x40xf32>, vector<40x128xf32>, vector<2x128xf32> -> vector<2x128xf32>
    %cst_28 = arith.constant dense<0.000000e+00> : vector<2xf32>
    %60 = vector.multi_reduction <add>, %59, %cst_28 [1] : vector<2x128xf32> to vector<2xf32>
    %61 = vector.shape_cast %60 : vector<2xf32> to vector<2x1xf32>
    %c0_29 = arith.constant 0 : index
    %c0_30 = arith.constant 0 : index
    %62 = vector.load %arg3[%c0_29, %c0_30] : memref<2x2xf32, #tpu.memory_space<vmem>>, vector<2x1xf32>
    tpu.vector_store %arg3[%c0_29, %c0_30], %61 {strides = array<i32>} : memref<2x2xf32, #tpu.memory_space<vmem>>, vector<2x1xf32>,
    %c584 = arith.constant 584 : index
    %c0_31 = arith.constant 0 : index
    %63 = vector.load %arg2[%c584, %c0_31] : memref<632x128xf32, #tpu.memory_space<vmem>>, vector<40x128xf32>
    %64 = arith.mulf %56, %63 : vector<40x128xf32>
    %cst_32 = arith.constant dense<0.000000e+00> : vector<2x128xf32>
    %65 = tpu.matmul %11, %64, %cst_32 {dimension_numbers = #tpu.dot_dimension_numbers<[1], [0], [0], [1], [0, 0, 1, 1], [], []>} : vector<2x40xf32>, vector<40x128xf32>, vector<2x128xf32> -> vector<2x128xf32>
    %cst_33 = arith.constant dense<0.000000e+00> : vector<2xf32>
    %66 = vector.multi_reduction <add>, %65, %cst_33 [1] : vector<2x128xf32> to vector<2xf32>
    %67 = vector.shape_cast %66 : vector<2xf32> to vector<2x1xf32>
    %c0_34 = arith.constant 0 : index
    %c1 = arith.constant 1 : index
    %68 = vector.load %arg3[%c0_34, %c1] : memref<2x2xf32, #tpu.memory_space<vmem>>, vector<2x1xf32>
    tpu.vector_store %arg3[%c0_34, %c1], %67 {strides = array<i32>} : memref<2x2xf32, #tpu.memory_space<vmem>>, vector<2x1xf32>,
    return
  }
  func.func @transform_0(%arg0: i32) -> (i32, i32) {
    %c0_i32 = arith.constant 0 : i32
    %c0_i32_0 = arith.constant 0 : i32
    %c0_i32_1 = arith.constant 0 : i32
    return %c0_i32, %c0_i32_0 : i32, i32
  }
  func.func @transform_1(%arg0: i32) -> (i32, i32) {
    %c0_i32 = arith.constant 0 : i32
    %c0_i32_0 = arith.constant 0 : i32
    %c0_i32_1 = arith.constant 0 : i32
    return %c0_i32, %c0_i32_0 : i32, i32
  }
  func.func @transform_2(%arg0: i32) -> (i32, i32) {
    %c0_i32 = arith.constant 0 : i32
    %c0_i32_0 = arith.constant 0 : i32
    %c0_i32_1 = arith.constant 0 : i32
    return %c0_i32, %c0_i32_0 : i32, i32
  }
  func.func @transform_3(%arg0: i32) -> (i32, i32) {
    %c0_i32 = arith.constant 0 : i32
    %c0_i32_0 = arith.constant 0 : i32
    %c0_i32_1 = arith.constant 0 : i32
    return %c0_i32, %c0_i32_0 : i32, i32
  }
}

</mosaic_0001>

<llo_original>
// kernel: ppnet_forward.1
$region0: #{ppnet_forward.1}
  #allocation0 [shape = 'u32[]', space=smem, size = 0x4, offset = 0x4, fixed_abs, tag = 'smem constant byte address 0x4 - core index']
  #allocation1 [shape = 'u32[144,128]{1,0:T(1,128)}', space=vmem, size = 0x12000, scoped, tag = 'internal scratch']
  %s0 = inlined_call_operand.vmem [shape: f32[40,18], index: 0, kind: input, shape index: {}]
  %s1 = inlined_call_operand.hbm [shape: f32[632,128], index: 1, kind: input, shape index: {}]
  %s2 = inlined_call_operand.hbm [shape: f32[2,2], index: 2, kind: output, shape index: {0}]
  %s3 = inlined_call_operand.vmem [shape: f32[40,128], index: 3, kind: output, shape index: {1}]
  %4 = xla_tuple %s2, %s3
  %s5 = sld [smem:[#allocation0]]
  $region30: #{ppnet_forward.1} parent=0
    _
  %s7 = ssub.s32 1, %s5
  %s8 = scalar_select 0, %s7, %s5
  $region1: #{ppnet_forward.1} parent=0
    #allocation2 [shape = 'u8[323584]{0}', space=vmem, size = 0x4f000, scoped, tag = 'input window, operand 1, single buffered']
    #allocation3 [shape = 's32[1]{0}', space=sflag, size = 0x4, scoped, tag = 'scoped memory for ppnet_forward.1']
    #allocation4 [shape = 's32[1]{0}', space=sflag, size = 0x4, scoped, tag = 'scoped memory for ppnet_forward.1']
    #allocation5 [shape = 'u8[1024]{0}', space=vmem, size = 0x400, scoped, tag = 'output window, operand 0, single buffered']
    %9 = vsyncpa [#allocation3], 0
    %10 = vsyncpa [#allocation4], 0
    // Predicated region
    $region2: #{ppnet_forward.1} parent=1 // pred_check
      _
    $region3: #{ppnet_forward.1} parent=1 // pred_check_branch
      %12 = sbr.rel (0) target = $region5
    $region4: #{ppnet_forward.1} parent=1 // pred_region
      _
    $region5: #{ppnet_forward.1} parent=1 // pred_fallthru
      _
    // Predicated region
    $region6: #{ppnet_forward.1} parent=1 // pred_check
      _
    $region7: #{ppnet_forward.1} parent=1 // pred_check_branch
      %14 = sbr.rel (0) target = $region9
    $region8: #{ppnet_forward.1} parent=1 // pred_region
      %s16 = ssub.s32 10112, 10112
      %17 = vsyncadd [#allocation3], %s16
      %s18 = sshll.u32 [#allocation2], 4
      %s19 = int_to_ptr.vmem [resolvable:$true] %s18
      %24 = dma.hbm_to_vmem [thread:$0]  %s1, 10112, %s19, [#allocation3], 128, 128, 8
    $region9: #{ppnet_forward.1} parent=1 // pred_fallthru
      _
    // Predicated region
    $region10: #{ppnet_forward.1} parent=1 // pred_check
      _
    $region11: #{ppnet_forward.1} parent=1 // pred_check_branch
      %26 = sbr.rel (0) target = $region13
    $region12: #{ppnet_forward.1} parent=1 // pred_region
      %27 = dma.done [#allocation3], 10112
    $region13: #{ppnet_forward.1} parent=1 // pred_fallthru
      _
    %v28 = vld [vmem:[%s0] sm:$0xff]
    %v29 = vld [vmem:[%s0 + $0x8] sm:$0xff]
    %v30 = vld [vmem:[%s0 + $0x10] sm:$0xff]
    %v31 = vld [vmem:[%s0 + $0x18] sm:$0xff]
    %v32 = vld [vmem:[%s0 + $0x20] sm:$0xff]
    %v33 = vld [vmem:[#allocation2] sm:$0xff]
    %v34 = vld [vmem:[#allocation2 + $0x8] sm:$0xff]
    %v35 = vld [vmem:[#allocation2 + $0x10] sm:$0x3]
    %v36 = vld [vmem:[#allocation2 + $0x18] sm:$0x1]
    %v37 = vld [vmem:[#allocation2 + $0x19] sm:$0x1]
    %v38 = vld [vmem:[#allocation2 + $0x1a] sm:$0x1]
    %v39 = vld [vmem:[#allocation2 + $0x1b] sm:$0x1]
    %v40 = vld [vmem:[#allocation2 + $0x1c] sm:$0x1]
    %v41 = vld [vmem:[#allocation2 + $0x20] sm:$0xff]
    %v42 = vld [vmem:[#allocation2 + $0x28] sm:$0xff]
    %v43 = vld [vmem:[#allocation2 + $0x30] sm:$0xff]
    %v44 = vld [vmem:[#allocation2 + $0x38] sm:$0xff]
    %v45 = vld [vmem:[#allocation2 + $0x40] sm:$0xff]
    %v46 = vld [vmem:[#allocation2 + $0x48] sm:$0xff]
    %v47 = vld [vmem:[#allocation2 + $0x50] sm:$0xff]
    %v48 = vld [vmem:[#allocation2 + $0x58] sm:$0xff]
    %v49 = vld [vmem:[#allocation2 + $0x60] sm:$0xff]
    %v50 = vld [vmem:[#allocation2 + $0x68] sm:$0xff]
    %v51 = vld [vmem:[#allocation2 + $0x70] sm:$0xff]
    %v52 = vld [vmem:[#allocation2 + $0x78] sm:$0xff]
    %v53 = vld [vmem:[#allocation2 + $0x80] sm:$0xff]
    %v54 = vld [vmem:[#allocation2 + $0x88] sm:$0xff]
    %v55 = vld [vmem:[#allocation2 + $0x90] sm:$0xff]
    %v56 = vld [vmem:[#allocation2 + $0x98] sm:$0xff]
    %v57 = vld [vmem:[#allocation2 + $0xa0] sm:$0xff]
    %v58 = vld [vmem:[#allocation2 + $0xa8] sm:$0xff]
    %v59 = vld [vmem:[#allocation2 + $0xb0] sm:$0xff]
    %v60 = vld [vmem:[#allocation2 + $0xb8] sm:$0xff]
    %v61 = vld [vmem:[#allocation2 + $0xc0] sm:$0xff]
    %v62 = vld [vmem:[#allocation2 + $0xc8] sm:$0xff]
    %v63 = vld [vmem:[#allocation2 + $0xd0] sm:$0xff]
    %v64 = vld [vmem:[#allocation2 + $0xd8] sm:$0xff]
    %v65 = vld [vmem:[#allocation2 + $0xe0] sm:$0xff]
    %v66 = vld [vmem:[#allocation2 + $0xe8] sm:$0xff]
    %v67 = vld [vmem:[#allocation2 + $0xf0] sm:$0xff]
    %v68 = vld [vmem:[#allocation2 + $0xf8] sm:$0xff]
    %v69 = vld [vmem:[#allocation2 + $0x100] sm:$0xff]
    %v70 = vld [vmem:[#allocation2 + $0x108] sm:$0xff]
    %v71 = vld [vmem:[#allocation2 + $0x110] sm:$0xff]
    %v72 = vld [vmem:[#allocation2 + $0x118] sm:$0xff]
    %v73 = vld [vmem:[#allocation2 + $0x120] sm:$0xff]
    %v74 = vld [vmem:[#allocation2 + $0x128] sm:$0xff]
    %v75 = vld [vmem:[#allocation2 + $0x130] sm:$0xff]
    %v76 = vld [vmem:[#allocation2 + $0x138] sm:$0xff]
    %v77 = vld [vmem:[#allocation2 + $0x140] sm:$0xff]
    %v78 = vld [vmem:[#allocation2 + $0x148] sm:$0xff]
    %v79 = vld [vmem:[#allocation2 + $0x150] sm:$0xff]
    %v80 = vld [vmem:[#allocation2 + $0x158] sm:$0xff]
    %v81 = vld [vmem:[#allocation2 + $0x160] sm:$0xff]
    %v82 = vld [vmem:[#allocation2 + $0x168] sm:$0xff]
    %v83 = vld [vmem:[#allocation2 + $0x170] sm:$0xff]
    %v84 = vld [vmem:[#allocation2 + $0x178] sm:$0xff]
    %v85 = vld [vmem:[#allocation2 + $0x180] sm:$0xff]
    %v86 = vld [vmem:[#allocation2 + $0x188] sm:$0xff]
    %v87 = vld [vmem:[#allocation2 + $0x190] sm:$0xff]
    %v88 = vld [vmem:[#allocation2 + $0x198] sm:$0xff]
    %v89 = vld [vmem:[#allocation2 + $0x1a0] sm:$0xff]
    %v90 = vld [vmem:[#allocation2 + $0x1a8] sm:$0xff]
    %v91 = vld [vmem:[#allocation2 + $0x1b0] sm:$0xff]
    %v92 = vld [vmem:[#allocation2 + $0x1b8] sm:$0xff]
    %v93 = vld [vmem:[#allocation2 + $0x1c0] sm:$0xff]
    %v94 = vld [vmem:[#allocation2 + $0x1c8] sm:$0xff]
    %v95 = vld [vmem:[#allocation2 + $0x1d0] sm:$0xff]
    %v96 = vld [vmem:[#allocation2 + $0x1d8] sm:$0xff]
    %v97 = vld [vmem:[#allocation2 + $0x1e0] sm:$0xff]
    %v98 = vld [vmem:[#allocation2 + $0x1e8] sm:$0xff]
    %v99 = vld [vmem:[#allocation2 + $0x1f0] sm:$0xff]
    %v100 = vld [vmem:[#allocation2 + $0x1f8] sm:$0xff]
    %v101 = vld [vmem:[#allocation2 + $0x200] sm:$0xff]
    %v102 = vld [vmem:[#allocation2 + $0x208] sm:$0xff]
    %v103 = vld [vmem:[#allocation2 + $0x210] sm:$0xff]
    %v104 = vld [vmem:[#allocation2 + $0x218] sm:$0xff]
    %v105 = vld [vmem:[#allocation2 + $0x270] sm:$0x3]
    %vm106 = vcmask 146432
    %v108 = vsel %vm106, %v28, 0
    %v111 = vsel %vm106, %v29, 0
    %v114 = vsel %vm106, %v30, 0
    %v117 = vsel %vm106, %v31, 0
    %v120 = vsel %vm106, %v32, 0
    %vm122 = vcmask 1041408
    %v124 = vsel %vm122, %v35, 0
    %126 = vmatprep.subr.mxu0 0.0
    %127 = vmatpush1.msra.mxu0 %v33
    %128 = vmatprep.subr.mxu0 0.0
    %129 = vmatpush1.msra.mxu0 %v34
    %130 = vmatprep.subr.mxu0 0.0
    %131 = vmatpush1.msra.mxu0 %v124
    %132 = vmatprep.subr.mxu0 0.0
    %133 = vmatpush1.msra.mxu0 0.0
    %134 = vmatprep.subr.mxu0 0.0
    %135 = vmatpush1.msra.mxu0 0.0
    %136 = vmatprep.subr.mxu0 0.0
    %137 = vmatpush1.msra.mxu0 0.0
    %138 = vmatprep.subr.mxu0 0.0
    %139 = vmatpush1.msra.mxu0 0.0
    %140 = vmatprep.subr.mxu0 0.0
    %141 = vmatpush1.msra.mxu0 0.0
    %142 = vmatprep.subr.mxu0 0.0
    %143 = vmatpush1.msra.mxu0 0.0
    %144 = vmatprep.subr.mxu0 0.0
    %145 = vmatpush1.msra.mxu0 0.0
    %146 = vmatprep.subr.mxu0 0.0
    %147 = vmatpush1.msra.mxu0 0.0
    %148 = vmatprep.subr.mxu0 0.0
    %149 = vmatpush1.msra.mxu0 0.0
    %150 = vmatprep.subr.mxu0 0.0
    %151 = vmatpush1.msra.mxu0 0.0
    %152 = vmatprep.subr.mxu0 0.0
    %153 = vmatpush1.msra.mxu0 0.0
    %154 = vmatprep.subr.mxu0 0.0
    %155 = vmatpush1.msra.mxu0 0.0
    %156 = vmatprep.subr.mxu0 0.0
    %157 = vmatpush1.msra.mxu0 0.0
    %158 = vmatprep.subr.mxu0 0.0
    %159 = vmatpush1.msra.mxu0 0.0
    %160 = vmatprep.subr.mxu0 0.0
    %161 = vmatpush1.msra.mxu0 0.0
    %162 = vmatprep.subr.mxu0 0.0
    %163 = vmatpush1.msra.mxu0 0.0
    %164 = vmatprep.subr.mxu0 0.0
    %165 = vmatpush1.msra.mxu0 0.0
    %166 = vmatprep.subr.mxu0 0.0
    %167 = vmatpush1.msra.mxu0 0.0
    %168 = vmatprep.subr.mxu0 0.0
    %169 = vmatpush1.msra.mxu0 0.0
    %170 = vmatprep.subr.mxu0 0.0
    %171 = vmatpush1.msra.mxu0 0.0
    %172 = vmatprep.subr.mxu0 0.0
    %173 = vmatpush1.msra.mxu0 0.0
    %174 = vmatprep.subr.mxu0 0.0
    %175 = vmatpush1.msra.mxu0 0.0
    %176 = vmatprep.subr.mxu0 0.0
    %177 = vmatpush1.msra.mxu0 0.0
    %178 = vmatprep.subr.mxu0 0.0
    %179 = vmatpush1.msra.mxu0 0.0
    %180 = vmatprep.subr.mxu0 0.0
    %181 = vmatpush1.msra.mxu0 0.0
    %182 = vmatprep.subr.mxu0 0.0
    %183 = vmatpush1.msra.mxu0 0.0
    %184 = vmatprep.subr.mxu0 0.0
    %185 = vmatpush1.msra.mxu0 0.0
    %186 = vmatprep.subr.mxu0 0.0
    %187 = vmatpush1.msra.mxu0 0.0
    %188 = vmatprep.subr.mxu0 0.0
    %189 = vmatpush1.msra.mxu0 0.0
    %190 = vmatprep.mubr.f32.mxu0 0.0
    %191 = vmatmul.mubr.f32.gmra.mrb[0].mxu0 %v108
    %v192 = vpop.f32.mrb[0].mxu0
    %v193 = vadd.f32 0.0, %v192
    %v194 = vpop.f32.mrb[0].mxu0
    %195 = vmatprep.mubr.f32.mxu0 0.0
    %196 = vmatmul.mubr.f32.gmra.mrb[0].mxu0 %v111
    %v197 = vpop.f32.mrb[0].mxu0
    %v198 = vadd.f32 0.0, %v197
    %v199 = vpop.f32.mrb[0].mxu0
    %200 = vmatprep.mubr.f32.mxu0 0.0
    %201 = vmatmul.mubr.f32.gmra.mrb[0].mxu0 %v114
    %v202 = vpop.f32.mrb[0].mxu0
    %v203 = vadd.f32 0.0, %v202
    %v204 = vpop.f32.mrb[0].mxu0
    %205 = vmatprep.mubr.f32.mxu0 0.0
    %206 = vmatmul.mubr.f32.gmra.mrb[0].mxu0 %v117
    %v207 = vpop.f32.mrb[0].mxu0
    %v208 = vadd.f32 0.0, %v207
    %v209 = vpop.f32.mrb[0].mxu0
    %210 = vmatprep.mubr.f32.mxu0 0.0
    %211 = vmatmul.mubr.f32.gmra.mrb[0].mxu0 %v120
    %v212 = vpop.f32.mrb[0].mxu0
    %v213 = vadd.f32 0.0, %v212
    %v214 = vpop.f32.mrb[0].mxu0
    %215 = vdwg.mxu0
    %v216 = vlaneseq
    %v217 = vshrl.u32 %v216, 7
    %v218 = vsub.s32 0, %v217
    %v219 = vrot.slane %v36, %v218
    %v220 = vmul.f32 %v193, %v219
    %v221 = vmul.f32 %v198, %v219
    %v222 = vmul.f32 %v203, %v219
    %v223 = vmul.f32 %v208, %v219
    %v224 = vmul.f32 %v213, %v219
    %v225 = vlaneseq
    %v226 = vshrl.u32 %v225, 7
    %v227 = vsub.s32 0, %v226
    %v228 = vrot.slane %v37, %v227
    %v229 = vadd.f32 %v220, %v228
    %v230 = vadd.f32 %v221, %v228
    %v231 = vadd.f32 %v222, %v228
    %v232 = vadd.f32 %v223, %v228
    %v233 = vadd.f32 %v224, %v228
    %v234 = vmax.f32 %v229, 0.0
    %v235 = vmax.f32 %v230, 0.0
    %v236 = vmax.f32 %v231, 0.0
    %v237 = vmax.f32 %v232, 0.0
    %v238 = vmax.f32 %v233, 0.0
    %v239 = vlaneseq
    %v240 = vshrl.u32 %v239, 7
    %v241 = vsub.s32 0, %v240
    %v242 = vrot.slane %v38, %v241
    %243 = vmatprep.subr.mxu0 0.0
    %244 = vmatpush1.msra.mxu0 %v41
    %245 = vmatprep.subr.mxu0 0.0
    %246 = vmatpush1.msra.mxu0 %v42
    %247 = vmatprep.subr.mxu0 0.0
    %248 = vmatpush1.msra.mxu0 %v43
    %249 = vmatprep.subr.mxu0 0.0
    %250 = vmatpush1.msra.mxu0 %v44
    %251 = vmatprep.subr.mxu0 0.0
    %252 = vmatpush1.msra.mxu0 %v45
    %253 = vmatprep.subr.mxu0 0.0
    %254 = vmatpush1.msra.mxu0 %v46
    %255 = vmatprep.subr.mxu0 0.0
    %256 = vmatpush1.msra.mxu0 %v47
    %257 = vmatprep.subr.mxu0 0.0
    %258 = vmatpush1.msra.mxu0 %v48
    %259 = vmatprep.subr.mxu0 0.0
    %260 = vmatpush1.msra.mxu0 %v49
    %261 = vmatprep.subr.mxu0 0.0
    %262 = vmatpush1.msra.mxu0 %v50
    %263 = vmatprep.subr.mxu0 0.0
    %264 = vmatpush1.msra.mxu0 %v51
    %265 = vmatprep.subr.mxu0 0.0
    %266 = vmatpush1.msra.mxu0 %v52
    %267 = vmatprep.subr.mxu0 0.0
    %268 = vmatpush1.msra.mxu0 %v53
    %269 = vmatprep.subr.mxu0 0.0
    %270 = vmatpush1.msra.mxu0 %v54
    %271 = vmatprep.subr.mxu0 0.0
    %272 = vmatpush1.msra.mxu0 %v55
    %273 = vmatprep.subr.mxu0 0.0
    %274 = vmatpush1.msra.mxu0 %v56
    %275 = vmatprep.subr.mxu0 0.0
    %276 = vmatpush1.msra.mxu0 0.0
    %277 = vmatprep.subr.mxu0 0.0
    %278 = vmatpush1.msra.mxu0 0.0
    %279 = vmatprep.subr.mxu0 0.0
    %280 = vmatpush1.msra.mxu0 0.0
    %281 = vmatprep.subr.mxu0 0.0
    %282 = vmatpush1.msra.mxu0 0.0
    %283 = vmatprep.subr.mxu0 0.0
    %284 = vmatpush1.msra.mxu0 0.0
    %285 = vmatprep.subr.mxu0 0.0
    %286 = vmatpush1.msra.mxu0 0.0
    %287 = vmatprep.subr.mxu0 0.0
    %288 = vmatpush1.msra.mxu0 0.0
    %289 = vmatprep.subr.mxu0 0.0
    %290 = vmatpush1.msra.mxu0 0.0
    %291 = vmatprep.subr.mxu0 0.0
    %292 = vmatpush1.msra.mxu0 0.0
    %293 = vmatprep.subr.mxu0 0.0
    %294 = vmatpush1.msra.mxu0 0.0
    %295 = vmatprep.subr.mxu0 0.0
    %296 = vmatpush1.msra.mxu0 0.0
    %297 = vmatprep.subr.mxu0 0.0
    %298 = vmatpush1.msra.mxu0 0.0
    %299 = vmatprep.subr.mxu0 0.0
    %300 = vmatpush1.msra.mxu0 0.0
    %301 = vmatprep.subr.mxu0 0.0
    %302 = vmatpush1.msra.mxu0 0.0
    %303 = vmatprep.subr.mxu0 0.0
    %304 = vmatpush1.msra.mxu0 0.0
    %305 = vmatprep.subr.mxu0 0.0
    %306 = vmatpush1.msra.mxu0 0.0
    %307 = vmatprep.mubr.f32.mxu0 0.0
    %308 = vmatmul.mubr.f32.gmra.mrb[0].mxu0 %v234
    %v309 = vpop.f32.mrb[0].mxu0
    %v310 = vadd.f32 %v242, %v309
    %v311 = vpop.f32.mrb[0].mxu0
    %312 = vmatprep.mubr.f32.mxu0 0.0
    %313 = vmatmul.mubr.f32.gmra.mrb[0].mxu0 %v235
    %v314 = vpop.f32.mrb[0].mxu0
    %v315 = vadd.f32 %v242, %v314
    %v316 = vpop.f32.mrb[0].mxu0
    %317 = vmatprep.mubr.f32.mxu0 0.0
    %318 = vmatmul.mubr.f32.gmra.mrb[0].mxu0 %v236
    %v319 = vpop.f32.mrb[0].mxu0
    %v320 = vadd.f32 %v242, %v319
    %v321 = vpop.f32.mrb[0].mxu0
    %322 = vmatprep.mubr.f32.mxu0 0.0
    %323 = vmatmul.mubr.f32.gmra.mrb[0].mxu0 %v237
    %v324 = vpop.f32.mrb[0].mxu0
    %v325 = vadd.f32 %v242, %v324
    %v326 = vpop.f32.mrb[0].mxu0
    %327 = vmatprep.mubr.f32.mxu0 0.0
    %328 = vmatmul.mubr.f32.gmra.mrb[0].mxu0 %v238
    %v329 = vpop.f32.mrb[0].mxu0
    %v330 = vadd.f32 %v242, %v329
    %v331 = vpop.f32.mrb[0].mxu0
    %332 = vdwg.mxu0
    %v333 = vmax.f32 %v310, 0.0
    %v334 = vmax.f32 %v315, 0.0
    %v335 = vmax.f32 %v320, 0.0
    %v336 = vmax.f32 %v325, 0.0
    %v337 = vmax.f32 %v330, 0.0
    %v338 = vlaneseq
    %v339 = vshrl.u32 %v338, 7
    %v340 = vsub.s32 0, %v339
    %v341 = vrot.slane %v39, %v340
    %342 = vmatprep.subr.mxu0 0.0
    %343 = vmatpush1.msra.mxu0 %v57
    %344 = vmatprep.subr.mxu0 0.0
    %345 = vmatpush1.msra.mxu0 %v58
    %346 = vmatprep.subr.mxu0 0.0
    %347 = vmatpush1.msra.mxu0 %v59
    %348 = vmatprep.subr.mxu0 0.0
    %349 = vmatpush1.msra.mxu0 %v60
    %350 = vmatprep.subr.mxu0 0.0
    %351 = vmatpush1.msra.mxu0 %v61
    %352 = vmatprep.subr.mxu0 0.0
    %353 = vmatpush1.msra.mxu0 %v62
    %354 = vmatprep.subr.mxu0 0.0
    %355 = vmatpush1.msra.mxu0 %v63
    %356 = vmatprep.subr.mxu0 0.0
    %357 = vmatpush1.msra.mxu0 %v64
    %358 = vmatprep.subr.mxu0 0.0
    %359 = vmatpush1.msra.mxu0 %v65
    %360 = vmatprep.subr.mxu0 0.0
    %361 = vmatpush1.msra.mxu0 %v66
    %362 = vmatprep.subr.mxu0 0.0
    %363 = vmatpush1.msra.mxu0 %v67
    %364 = vmatprep.subr.mxu0 0.0
    %365 = vmatpush1.msra.mxu0 %v68
    %366 = vmatprep.subr.mxu0 0.0
    %367 = vmatpush1.msra.mxu0 %v69
    %368 = vmatprep.subr.mxu0 0.0
    %369 = vmatpush1.msra.mxu0 %v70
    %370 = vmatprep.subr.mxu0 0.0
    %371 = vmatpush1.msra.mxu0 %v71
    %372 = vmatprep.subr.mxu0 0.0
    %373 = vmatpush1.msra.mxu0 %v72
    %374 = vmatprep.subr.mxu0 0.0
    %375 = vmatpush1.msra.mxu0 0.0
    %376 = vmatprep.subr.mxu0 0.0
    %377 = vmatpush1.msra.mxu0 0.0
    %378 = vmatprep.subr.mxu0 0.0
    %379 = vmatpush1.msra.mxu0 0.0
    %380 = vmatprep.subr.mxu0 0.0
    %381 = vmatpush1.msra.mxu0 0.0
    %382 = vmatprep.subr.mxu0 0.0
    %383 = vmatpush1.msra.mxu0 0.0
    %384 = vmatprep.subr.mxu0 0.0
    %385 = vmatpush1.msra.mxu0 0.0
    %386 = vmatprep.subr.mxu0 0.0
    %387 = vmatpush1.msra.mxu0 0.0
    %388 = vmatprep.subr.mxu0 0.0
    %389 = vmatpush1.msra.mxu0 0.0
    %390 = vmatprep.subr.mxu0 0.0
    %391 = vmatpush1.msra.mxu0 0.0
    %392 = vmatprep.subr.mxu0 0.0
    %393 = vmatpush1.msra.mxu0 0.0
    %394 = vmatprep.subr.mxu0 0.0
    %395 = vmatpush1.msra.mxu0 0.0
    %396 = vmatprep.subr.mxu0 0.0
    %397 = vmatpush1.msra.mxu0 0.0
    %398 = vmatprep.subr.mxu0 0.0
    %399 = vmatpush1.msra.mxu0 0.0
    %400 = vmatprep.subr.mxu0 0.0
    %401 = vmatpush1.msra.mxu0 0.0
    %402 = vmatprep.subr.mxu0 0.0
    %403 = vmatpush1.msra.mxu0 0.0
    %404 = vmatprep.subr.mxu0 0.0
    %405 = vmatpush1.msra.mxu0 0.0
    %406 = vmatprep.mubr.f32.mxu0 0.0
    %407 = vmatmul.mubr.f32.gmra.mrb[0].mxu0 %v333
    %v408 = vpop.f32.mrb[0].mxu0
    %v409 = vadd.f32 %v341, %v408
    %v410 = vpop.f32.mrb[0].mxu0
    %411 = vmatprep.mubr.f32.mxu0 0.0
    %412 = vmatmul.mubr.f32.gmra.mrb[0].mxu0 %v334
    %v413 = vpop.f32.mrb[0].mxu0
    %v414 = vadd.f32 %v341, %v413
    %v415 = vpop.f32.mrb[0].mxu0
    %416 = vmatprep.mubr.f32.mxu0 0.0
    %417 = vmatmul.mubr.f32.gmra.mrb[0].mxu0 %v335
    %v418 = vpop.f32.mrb[0].mxu0
    %v419 = vadd.f32 %v341, %v418
    %v420 = vpop.f32.mrb[0].mxu0
    %421 = vmatprep.mubr.f32.mxu0 0.0
    %422 = vmatmul.mubr.f32.gmra.mrb[0].mxu0 %v336
    %v423 = vpop.f32.mrb[0].mxu0
    %v424 = vadd.f32 %v341, %v423
    %v425 = vpop.f32.mrb[0].mxu0
    %426 = vmatprep.mubr.f32.mxu0 0.0
    %427 = vmatmul.mubr.f32.gmra.mrb[0].mxu0 %v337
    %v428 = vpop.f32.mrb[0].mxu0
    %v429 = vadd.f32 %v341, %v428
    %v430 = vpop.f32.mrb[0].mxu0
    %431 = vdwg.mxu0
    %v432 = vxor.u32 %v409, 2147483648
    %v433 = vxor.u32 %v414, 2147483648
    %v434 = vxor.u32 %v419, 2147483648
    %v435 = vxor.u32 %v424, 2147483648
    %v436 = vxor.u32 %v429, 2147483648
    %v437 = vmul.f32 %v432, 1.442695
    %v438 = vpow.pop %v437
    %v439 = vmul.f32 %v433, 1.442695
    %v440 = vpow.pop %v439
    %v441 = vmul.f32 %v434, 1.442695
    %v442 = vpow.pop %v441
    %v443 = vmul.f32 %v435, 1.442695
    %v444 = vpow.pop %v443
    %v445 = vmul.f32 %v436, 1.442695
    %v446 = vpow.pop %v445
    %v447 = vadd.f32 %v438, 1.0
    %v448 = vadd.f32 %v440, 1.0
    %v449 = vadd.f32 %v442, 1.0
    %v450 = vadd.f32 %v444, 1.0
    %v451 = vadd.f32 %v446, 1.0
    %v452 = vrcp.pop %v447
    %v453 = vmul.f32 1.0, %v452
    %v454 = vrcp.pop %v448
    %v455 = vmul.f32 1.0, %v454
    %v456 = vrcp.pop %v449
    %v457 = vmul.f32 1.0, %v456
    %v458 = vrcp.pop %v450
    %v459 = vmul.f32 1.0, %v458
    %v460 = vrcp.pop %v451
    %v461 = vmul.f32 1.0, %v460
    %v462 = vmul.f32 %v453, %v453
    %v463 = vmul.f32 %v455, %v455
    %v464 = vmul.f32 %v457, %v457
    %v465 = vmul.f32 %v459, %v459
    %v466 = vmul.f32 %v461, %v461
    %467 = vmatprep.subr.mxu0 0.0
    %468 = vmatpush1.msra.mxu0 %v89
    %469 = vmatprep.subr.mxu0 0.0
    %470 = vmatpush1.msra.mxu0 %v90
    %471 = vmatprep.subr.mxu0 0.0
    %472 = vmatpush1.msra.mxu0 %v91
    %473 = vmatprep.subr.mxu0 0.0
    %474 = vmatpush1.msra.mxu0 %v92
    %475 = vmatprep.subr.mxu0 0.0
    %476 = vmatpush1.msra.mxu0 %v93
    %477 = vmatprep.subr.mxu0 0.0
    %478 = vmatpush1.msra.mxu0 %v94
    %479 = vmatprep.subr.mxu0 0.0
    %480 = vmatpush1.msra.mxu0 %v95
    %481 = vmatprep.subr.mxu0 0.0
    %482 = vmatpush1.msra.mxu0 %v96
    %483 = vmatprep.subr.mxu0 0.0
    %484 = vmatpush1.msra.mxu0 %v97
    %485 = vmatprep.subr.mxu0 0.0
    %486 = vmatpush1.msra.mxu0 %v98
    %487 = vmatprep.subr.mxu0 0.0
    %488 = vmatpush1.msra.mxu0 %v99
    %489 = vmatprep.subr.mxu0 0.0
    %490 = vmatpush1.msra.mxu0 %v100
    %491 = vmatprep.subr.mxu0 0.0
    %492 = vmatpush1.msra.mxu0 %v101
    %493 = vmatprep.subr.mxu0 0.0
    %494 = vmatpush1.msra.mxu0 %v102
    %495 = vmatprep.subr.mxu0 0.0
    %496 = vmatpush1.msra.mxu0 %v103
    %497 = vmatprep.subr.mxu0 0.0
    %498 = vmatpush1.msra.mxu0 %v104
    %499 = vmatprep.subr.mxu0 0.0
    %500 = vmatpush1.msra.mxu0 0.0
    %501 = vmatprep.subr.mxu0 0.0
    %502 = vmatpush1.msra.mxu0 0.0
    %503 = vmatprep.subr.mxu0 0.0
    %504 = vmatpush1.msra.mxu0 0.0
    %505 = vmatprep.subr.mxu0 0.0
    %506 = vmatpush1.msra.mxu0 0.0
    %507 = vmatprep.subr.mxu0 0.0
    %508 = vmatpush1.msra.mxu0 0.0
    %509 = vmatprep.subr.mxu0 0.0
    %510 = vmatpush1.msra.mxu0 0.0
    %511 = vmatprep.subr.mxu0 0.0
    %512 = vmatpush1.msra.mxu0 0.0
    %513 = vmatprep.subr.mxu0 0.0
    %514 = vmatpush1.msra.mxu0 0.0
    %515 = vmatprep.subr.mxu0 0.0
    %516 = vmatpush1.msra.mxu0 0.0
    %517 = vmatprep.subr.mxu0 0.0
    %518 = vmatpush1.msra.mxu0 0.0
    %519 = vmatprep.subr.mxu0 0.0
    %520 = vmatpush1.msra.mxu0 0.0
    %521 = vmatprep.subr.mxu0 0.0
    %522 = vmatpush1.msra.mxu0 0.0
    %523 = vmatprep.subr.mxu0 0.0
    %524 = vmatpush1.msra.mxu0 0.0
    %525 = vmatprep.subr.mxu0 0.0
    %526 = vmatpush1.msra.mxu0 0.0
    %527 = vmatprep.subr.mxu0 0.0
    %528 = vmatpush1.msra.mxu0 0.0
    %529 = vmatprep.subr.mxu0 0.0
    %530 = vmatpush1.msra.mxu0 0.0
    %531 = vmatprep.mubr.f32.mxu0 0.0
    %532 = vmatmul.mubr.f32.gmra.mrb[0].mxu0 %v462
    %v533 = vpop.f32.mrb[0].mxu0
    %v534 = vadd.f32 0.0, %v533
    %v535 = vpop.f32.mrb[0].mxu0
    %536 = vmatprep.mubr.f32.mxu0 0.0
    %537 = vmatmul.mubr.f32.gmra.mrb[0].mxu0 %v463
    %v538 = vpop.f32.mrb[0].mxu0
    %v539 = vadd.f32 0.0, %v538
    %v540 = vpop.f32.mrb[0].mxu0
    %541 = vmatprep.mubr.f32.mxu0 0.0
    %542 = vmatmul.mubr.f32.gmra.mrb[0].mxu0 %v464
    %v543 = vpop.f32.mrb[0].mxu0
    %v544 = vadd.f32 0.0, %v543
    %v545 = vpop.f32.mrb[0].mxu0
    %546 = vmatprep.mubr.f32.mxu0 0.0
    %547 = vmatmul.mubr.f32.gmra.mrb[0].mxu0 %v465
    %v548 = vpop.f32.mrb[0].mxu0
    %v549 = vadd.f32 0.0, %v548
    %v550 = vpop.f32.mrb[0].mxu0
    %551 = vmatprep.mubr.f32.mxu0 0.0
    %552 = vmatmul.mubr.f32.gmra.mrb[0].mxu0 %v466
    %v553 = vpop.f32.mrb[0].mxu0
    %v554 = vadd.f32 0.0, %v553
    %v555 = vpop.f32.mrb[0].mxu0
    %556 = vdwg.mxu0
    %557 = vmatprep.subr.mxu0 0.0
    %558 = vmatpush1.msra.mxu0 %v73
    %559 = vmatprep.subr.mxu0 0.0
    %560 = vmatpush1.msra.mxu0 %v74
    %561 = vmatprep.subr.mxu0 0.0
    %562 = vmatpush1.msra.mxu0 %v75
    %563 = vmatprep.subr.mxu0 0.0
    %564 = vmatpush1.msra.mxu0 %v76
    %565 = vmatprep.subr.mxu0 0.0
    %566 = vmatpush1.msra.mxu0 %v77
    %567 = vmatprep.subr.mxu0 0.0
    %568 = vmatpush1.msra.mxu0 %v78
    %569 = vmatprep.subr.mxu0 0.0
    %570 = vmatpush1.msra.mxu0 %v79
    %571 = vmatprep.subr.mxu0 0.0
    %572 = vmatpush1.msra.mxu0 %v80
    %573 = vmatprep.subr.mxu0 0.0
    %574 = vmatpush1.msra.mxu0 %v81
    %575 = vmatprep.subr.mxu0 0.0
    %576 = vmatpush1.msra.mxu0 %v82
    %577 = vmatprep.subr.mxu0 0.0
    %578 = vmatpush1.msra.mxu0 %v83
    %579 = vmatprep.subr.mxu0 0.0
    %580 = vmatpush1.msra.mxu0 %v84
    %581 = vmatprep.subr.mxu0 0.0
    %582 = vmatpush1.msra.mxu0 %v85
    %583 = vmatprep.subr.mxu0 0.0
    %584 = vmatpush1.msra.mxu0 %v86
    %585 = vmatprep.subr.mxu0 0.0
    %586 = vmatpush1.msra.mxu0 %v87
    %587 = vmatprep.subr.mxu0 0.0
    %588 = vmatpush1.msra.mxu0 %v88
    %589 = vmatprep.subr.mxu0 0.0
    %590 = vmatpush1.msra.mxu0 0.0
    %591 = vmatprep.subr.mxu0 0.0
    %592 = vmatpush1.msra.mxu0 0.0
    %593 = vmatprep.subr.mxu0 0.0
    %594 = vmatpush1.msra.mxu0 0.0
    %595 = vmatprep.subr.mxu0 0.0
    %596 = vmatpush1.msra.mxu0 0.0
    %597 = vmatprep.subr.mxu0 0.0
    %598 = vmatpush1.msra.mxu0 0.0
    %599 = vmatprep.subr.mxu0 0.0
    %600 = vmatpush1.msra.mxu0 0.0
    %601 = vmatprep.subr.mxu0 0.0
    %602 = vmatpush1.msra.mxu0 0.0
    %603 = vmatprep.subr.mxu0 0.0
    %604 = vmatpush1.msra.mxu0 0.0
    %605 = vmatprep.subr.mxu0 0.0
    %606 = vmatpush1.msra.mxu0 0.0
    %607 = vmatprep.subr.mxu0 0.0
    %608 = vmatpush1.msra.mxu0 0.0
    %609 = vmatprep.subr.mxu0 0.0
    %610 = vmatpush1.msra.mxu0 0.0
    %611 = vmatprep.subr.mxu0 0.0
    %612 = vmatpush1.msra.mxu0 0.0
    %613 = vmatprep.subr.mxu0 0.0
    %614 = vmatpush1.msra.mxu0 0.0
    %615 = vmatprep.subr.mxu0 0.0
    %616 = vmatpush1.msra.mxu0 0.0
    %617 = vmatprep.subr.mxu0 0.0
    %618 = vmatpush1.msra.mxu0 0.0
    %619 = vmatprep.subr.mxu0 0.0
    %620 = vmatpush1.msra.mxu0 0.0
    %621 = vmatprep.mubr.f32.mxu0 0.0
    %622 = vmatmul.mubr.f32.gmra.mrb[0].mxu0 %v453
    %v623 = vpop.f32.mrb[0].mxu0
    %v624 = vadd.f32 0.0, %v623
    %v625 = vpop.f32.mrb[0].mxu0
    %626 = vmatprep.mubr.f32.mxu0 0.0
    %627 = vmatmul.mubr.f32.gmra.mrb[0].mxu0 %v455
    %v628 = vpop.f32.mrb[0].mxu0
    %v629 = vadd.f32 0.0, %v628
    %v630 = vpop.f32.mrb[0].mxu0
    %631 = vmatprep.mubr.f32.mxu0 0.0
    %632 = vmatmul.mubr.f32.gmra.mrb[0].mxu0 %v457
    %v633 = vpop.f32.mrb[0].mxu0
    %v634 = vadd.f32 0.0, %v633
    %v635 = vpop.f32.mrb[0].mxu0
    %636 = vmatprep.mubr.f32.mxu0 0.0
    %637 = vmatmul.mubr.f32.gmra.mrb[0].mxu0 %v459
    %v638 = vpop.f32.mrb[0].mxu0
    %v639 = vadd.f32 0.0, %v638
    %v640 = vpop.f32.mrb[0].mxu0
    %641 = vmatprep.mubr.f32.mxu0 0.0
    %642 = vmatmul.mubr.f32.gmra.mrb[0].mxu0 %v461
    %v643 = vpop.f32.mrb[0].mxu0
    %v644 = vadd.f32 0.0, %v643
    %v645 = vpop.f32.mrb[0].mxu0
    %646 = vdwg.mxu0
    %v647 = vmul.f32 %v624, 2.0
    %v648 = vmul.f32 %v629, 2.0
    %v649 = vmul.f32 %v634, 2.0
    %v650 = vmul.f32 %v639, 2.0
    %v651 = vmul.f32 %v644, 2.0
    %v652 = vsub.f32 %v534, %v647
    %v653 = vsub.f32 %v539, %v648
    %v654 = vsub.f32 %v544, %v649
    %v655 = vsub.f32 %v549, %v650
    %v656 = vsub.f32 %v554, %v651
    %v657 = vlaneseq
    %v658 = vshrl.u32 %v657, 7
    %v659 = vsub.s32 0, %v658
    %v660 = vrot.slane %v40, %v659
    %v661 = vadd.f32 %v652, %v660
    %v662 = vadd.f32 %v653, %v660
    %v663 = vadd.f32 %v654, %v660
    %v664 = vadd.f32 %v655, %v660
    %v665 = vadd.f32 %v656, %v660
    %v666 = vmax.f32 %v661, 0.0
    %v667 = vmax.f32 %v662, 0.0
    %v668 = vmax.f32 %v663, 0.0
    %v669 = vmax.f32 %v664, 0.0
    %v670 = vmax.f32 %v665, 0.0
    %671 = vrot.lane.b32.xlu0 %v666, 8
    %v672 = vpop.permute.xlu0 %671
    %673 = vrot.lane.b32.xlu0 %v667, 8
    %v674 = vpop.permute.xlu0 %673
    %675 = vrot.lane.b32.xlu0 %v668, 8
    %v676 = vpop.permute.xlu0 %675
    %677 = vrot.lane.b32.xlu0 %v669, 8
    %v678 = vpop.permute.xlu0 %677
    %679 = vrot.lane.b32.xlu0 %v670, 8
    %v680 = vpop.permute.xlu0 %679
    %v681 = vmin.f32 %v666, %v672
    %v682 = vmin.f32 %v667, %v674
    %v683 = vmin.f32 %v668, %v676
    %v684 = vmin.f32 %v669, %v678
    %v685 = vmin.f32 %v670, %v680
    %686 = vrot.lane.b32.xlu0 %v681, 16
    %v687 = vpop.permute.xlu0 %686
    %688 = vrot.lane.b32.xlu0 %v682, 16
    %v689 = vpop.permute.xlu0 %688
    %690 = vrot.lane.b32.xlu0 %v683, 16
    %v691 = vpop.permute.xlu0 %690
    %692 = vrot.lane.b32.xlu0 %v684, 16
    %v693 = vpop.permute.xlu0 %692
    %694 = vrot.lane.b32.xlu0 %v685, 16
    %v695 = vpop.permute.xlu0 %694
    %v696 = vmin.f32 %v681, %v687
    %v697 = vmin.f32 %v682, %v689
    %v698 = vmin.f32 %v683, %v691
    %v699 = vmin.f32 %v684, %v693
    %v700 = vmin.f32 %v685, %v695
    %701 = vrot.lane.b32.xlu0 %v696, 32
    %v702 = vpop.permute.xlu0 %701
    %703 = vrot.lane.b32.xlu0 %v697, 32
    %v704 = vpop.permute.xlu0 %703
    %705 = vrot.lane.b32.xlu0 %v698, 32
    %v706 = vpop.permute.xlu0 %705
    %707 = vrot.lane.b32.xlu0 %v699, 32
    %v708 = vpop.permute.xlu0 %707
    %709 = vrot.lane.b32.xlu0 %v700, 32
    %v710 = vpop.permute.xlu0 %709
    %v711 = vmin.f32 %v696, %v702
    %v712 = vmin.f32 %v697, %v704
    %v713 = vmin.f32 %v698, %v706
    %v714 = vmin.f32 %v699, %v708
    %v715 = vmin.f32 %v700, %v710
    %716 = vrot.lane.b32.xlu0 %v711, 64
    %v717 = vpop.permute.xlu0 %716
    %718 = vrot.lane.b32.xlu0 %v712, 64
    %v719 = vpop.permute.xlu0 %718
    %720 = vrot.lane.b32.xlu0 %v713, 64
    %v721 = vpop.permute.xlu0 %720
    %722 = vrot.lane.b32.xlu0 %v714, 64
    %v723 = vpop.permute.xlu0 %722
    %724 = vrot.lane.b32.xlu0 %v715, 64
    %v725 = vpop.permute.xlu0 %724
    %v726 = vmin.f32 %v711, %v717
    %v727 = vmin.f32 %v712, %v719
    %v728 = vmin.f32 %v713, %v721
    %v729 = vmin.f32 %v714, %v723
    %v730 = vmin.f32 %v715, %v725
    %731 = vst [vmem:[%s3] sm:$0xff] %v726
    %732 = vst [vmem:[%s3 + $0x8] sm:$0xff] %v727
    %733 = vst [vmem:[%s3 + $0x10] sm:$0xff] %v728
    %734 = vst [vmem:[%s3 + $0x18] sm:$0xff] %v729
    %735 = vst [vmem:[%s3 + $0x20] sm:$0xff] %v730
    %v736 = vadd.f32 %v726, 1.0
    %v737 = vadd.f32 %v727, 1.0
    %v738 = vadd.f32 %v728, 1.0
    %v739 = vadd.f32 %v729, 1.0
    %v740 = vadd.f32 %v730, 1.0
    %v741 = vadd.f32 %v726, 0.0001
    %v742 = vadd.f32 %v727, 0.0001
    %v743 = vadd.f32 %v728, 0.0001
    %v744 = vadd.f32 %v729, 0.0001
    %v745 = vadd.f32 %v730, 0.0001
    %v746 = vrcp.pop %v741
    %v747 = vmul.f32 %v736, %v746
    %v748 = vrcp.pop %v742
    %v749 = vmul.f32 %v737, %v748
    %v750 = vrcp.pop %v743
    %v751 = vmul.f32 %v738, %v750
    %v752 = vrcp.pop %v744
    %v753 = vmul.f32 %v739, %v752
    %v754 = vrcp.pop %v745
    %v755 = vmul.f32 %v740, %v754
    %v756 = vlog2.pop %v747
    %v757 = vmul.f32 %v756, 0.6931472
    %v758 = vlog2.pop %v749
    %v759 = vmul.f32 %v758, 0.6931472
    %v760 = vlog2.pop %v751
    %v761 = vmul.f32 %v760, 0.6931472
    %v762 = vlog2.pop %v753
    %v763 = vmul.f32 %v762, 0.6931472
    %v764 = vlog2.pop %v755
    %v765 = vmul.f32 %v764, 0.6931472
    %v766 = vld [vmem:[#allocation2 + $0x220] sm:$0xff]
    %v767 = vld [vmem:[#allocation2 + $0x228] sm:$0xff]
    %v768 = vld [vmem:[#allocation2 + $0x230] sm:$0xff]
    %v769 = vld [vmem:[#allocation2 + $0x238] sm:$0xff]
    %v770 = vld [vmem:[#allocation2 + $0x240] sm:$0xff]
    %v771 = vmul.f32 %v757, %v766
    %v772 = vmul.f32 %v759, %v767
    %v773 = vmul.f32 %v761, %v768
    %v774 = vmul.f32 %v763, %v769
    %v775 = vmul.f32 %v765, %v770
    %vm776 = vcmask 326656
    %v778 = vsel %vm776, %v105, 0
    %780 = vmatprep.subr.mxu0 0.0
    %781 = vmatpush1.msra.mxu0 %v771
    %782 = vmatprep.subr.mxu0 0.0
    %783 = vmatpush1.msra.mxu0 %v772
    %784 = vmatprep.subr.mxu0 0.0
    %785 = vmatpush1.msra.mxu0 %v773
    %786 = vmatprep.subr.mxu0 0.0
    %787 = vmatpush1.msra.mxu0 %v774
    %788 = vmatprep.subr.mxu0 0.0
    %789 = vmatpush1.msra.mxu0 %v775
    %790 = vmatprep.subr.mxu0 0.0
    %791 = vmatpush1.msra.mxu0 0.0
    %792 = vmatprep.subr.mxu0 0.0
    %793 = vmatpush1.msra.mxu0 0.0
    %794 = vmatprep.subr.mxu0 0.0
    %795 = vmatpush1.msra.mxu0 0.0
    %796 = vmatprep.subr.mxu0 0.0
    %797 = vmatpush1.msra.mxu0 0.0
    %798 = vmatprep.subr.mxu0 0.0
    %799 = vmatpush1.msra.mxu0 0.0
    %800 = vmatprep.subr.mxu0 0.0
    %801 = vmatpush1.msra.mxu0 0.0
    %802 = vmatprep.subr.mxu0 0.0
    %803 = vmatpush1.msra.mxu0 0.0
    %804 = vmatprep.subr.mxu0 0.0
    %805 = vmatpush1.msra.mxu0 0.0
    %806 = vmatprep.subr.mxu0 0.0
    %807 = vmatpush1.msra.mxu0 0.0
    %808 = vmatprep.subr.mxu0 0.0
    %809 = vmatpush1.msra.mxu0 0.0
    %810 = vmatprep.subr.mxu0 0.0
    %811 = vmatpush1.msra.mxu0 0.0
    %812 = vmatprep.subr.mxu0 0.0
    %813 = vmatpush1.msra.mxu0 0.0
    %814 = vmatprep.subr.mxu0 0.0
    %815 = vmatpush1.msra.mxu0 0.0
    %816 = vmatprep.subr.mxu0 0.0
    %817 = vmatpush1.msra.mxu0 0.0
    %818 = vmatprep.subr.mxu0 0.0
    %819 = vmatpush1.msra.mxu0 0.0
    %820 = vmatprep.subr.mxu0 0.0
    %821 = vmatpush1.msra.mxu0 0.0
    %822 = vmatprep.subr.mxu0 0.0
    %823 = vmatpush1.msra.mxu0 0.0
    %824 = vmatprep.subr.mxu0 0.0
    %825 = vmatpush1.msra.mxu0 0.0
    %826 = vmatprep.subr.mxu0 0.0
    %827 = vmatpush1.msra.mxu0 0.0
    %828 = vmatprep.subr.mxu0 0.0
    %829 = vmatpush1.msra.mxu0 0.0
    %830 = vmatprep.subr.mxu0 0.0
    %831 = vmatpush1.msra.mxu0 0.0
    %832 = vmatprep.subr.mxu0 0.0
    %833 = vmatpush1.msra.mxu0 0.0
    %834 = vmatprep.subr.mxu0 0.0
    %835 = vmatpush1.msra.mxu0 0.0
    %836 = vmatprep.subr.mxu0 0.0
    %837 = vmatpush1.msra.mxu0 0.0
    %838 = vmatprep.subr.mxu0 0.0
    %839 = vmatpush1.msra.mxu0 0.0
    %840 = vmatprep.subr.mxu0 0.0
    %841 = vmatpush1.msra.mxu0 0.0
    %842 = vmatprep.subr.mxu0 0.0
    %843 = vmatpush1.msra.mxu0 0.0
    %844 = vmatprep.mubr.f32.mxu0 0.0
    %845 = vmatmul.mubr.f32.gmra.mrb[0].mxu0 %v778
    %v846 = vpop.f32.mrb[0].mxu0
    %v847 = vadd.f32 0.0, %v846
    %v848 = vpop.f32.mrb[0].mxu0
    %849 = vdwg.mxu0
    %v850 = vsel %vm122, %v847, 0.0
    %851 = vadd.xlane.f32.xlu0 %v850
    %v852 = vpop.xlane.xlu0 %851
    %vm853 = vcmask 1024
    %854 = vst.msk [vmem:[#allocation5] sm:$0x3] %vm853, %v852
    %v855 = vld [vmem:[#allocation2 + $0x248] sm:$0xff]
    %v856 = vld [vmem:[#allocation2 + $0x250] sm:$0xff]
    %v857 = vld [vmem:[#allocation2 + $0x258] sm:$0xff]
    %v858 = vld [vmem:[#allocation2 + $0x260] sm:$0xff]
    %v859 = vld [vmem:[#allocation2 + $0x268] sm:$0xff]
    %v860 = vmul.f32 %v757, %v855
    %v861 = vmul.f32 %v759, %v856
    %v862 = vmul.f32 %v761, %v857
    %v863 = vmul.f32 %v763, %v858
    %v864 = vmul.f32 %v765, %v859
    %865 = vmatprep.subr.mxu0 0.0
    %866 = vmatpush1.msra.mxu0 %v860
    %867 = vmatprep.subr.mxu0 0.0
    %868 = vmatpush1.msra.mxu0 %v861
    %869 = vmatprep.subr.mxu0 0.0
    %870 = vmatpush1.msra.mxu0 %v862
    %871 = vmatprep.subr.mxu0 0.0
    %872 = vmatpush1.msra.mxu0 %v863
    %873 = vmatprep.subr.mxu0 0.0
    %874 = vmatpush1.msra.mxu0 %v864
    %875 = vmatprep.subr.mxu0 0.0
    %876 = vmatpush1.msra.mxu0 0.0
    %877 = vmatprep.subr.mxu0 0.0
    %878 = vmatpush1.msra.mxu0 0.0
    %879 = vmatprep.subr.mxu0 0.0
    %880 = vmatpush1.msra.mxu0 0.0
    %881 = vmatprep.subr.mxu0 0.0
    %882 = vmatpush1.msra.mxu0 0.0
    %883 = vmatprep.subr.mxu0 0.0
    %884 = vmatpush1.msra.mxu0 0.0
    %885 = vmatprep.subr.mxu0 0.0
    %886 = vmatpush1.msra.mxu0 0.0
    %887 = vmatprep.subr.mxu0 0.0
    %888 = vmatpush1.msra.mxu0 0.0
    %889 = vmatprep.subr.mxu0 0.0
    %890 = vmatpush1.msra.mxu0 0.0
    %891 = vmatprep.subr.mxu0 0.0
    %892 = vmatpush1.msra.mxu0 0.0
    %893 = vmatprep.subr.mxu0 0.0
    %894 = vmatpush1.msra.mxu0 0.0
    %895 = vmatprep.subr.mxu0 0.0
    %896 = vmatpush1.msra.mxu0 0.0
    %897 = vmatprep.subr.mxu0 0.0
    %898 = vmatpush1.msra.mxu0 0.0
    %899 = vmatprep.subr.mxu0 0.0
    %900 = vmatpush1.msra.mxu0 0.0
    %901 = vmatprep.subr.mxu0 0.0
    %902 = vmatpush1.msra.mxu0 0.0
    %903 = vmatprep.subr.mxu0 0.0
    %904 = vmatpush1.msra.mxu0 0.0
    %905 = vmatprep.subr.mxu0 0.0
    %906 = vmatpush1.msra.mxu0 0.0
    %907 = vmatprep.subr.mxu0 0.0
    %908 = vmatpush1.msra.mxu0 0.0
    %909 = vmatprep.subr.mxu0 0.0
    %910 = vmatpush1.msra.mxu0 0.0
    %911 = vmatprep.subr.mxu0 0.0
    %912 = vmatpush1.msra.mxu0 0.0
    %913 = vmatprep.subr.mxu0 0.0
    %914 = vmatpush1.msra.mxu0 0.0
    %915 = vmatprep.subr.mxu0 0.0
    %916 = vmatpush1.msra.mxu0 0.0
    %917 = vmatprep.subr.mxu0 0.0
    %918 = vmatpush1.msra.mxu0 0.0
    %919 = vmatprep.subr.mxu0 0.0
    %920 = vmatpush1.msra.mxu0 0.0
    %921 = vmatprep.subr.mxu0 0.0
    %922 = vmatpush1.msra.mxu0 0.0
    %923 = vmatprep.subr.mxu0 0.0
    %924 = vmatpush1.msra.mxu0 0.0
    %925 = vmatprep.subr.mxu0 0.0
    %926 = vmatpush1.msra.mxu0 0.0
    %927 = vmatprep.subr.mxu0 0.0
    %928 = vmatpush1.msra.mxu0 0.0
    %929 = vmatprep.mubr.f32.mxu0 0.0
    %930 = vmatmul.mubr.f32.gmra.mrb[0].mxu0 %v778
    %v931 = vpop.f32.mrb[0].mxu0
    %v932 = vadd.f32 0.0, %v931
    %v933 = vpop.f32.mrb[0].mxu0
    %934 = vdwg.mxu0
    %v935 = vsel %vm122, %v932, 0.0
    %936 = vadd.xlane.f32.xlu0 %v935
    %v937 = vpop.xlane.xlu0 %936
    %vm938 = vcmask 9224
    %939 = vst.msk [vmem:[#allocation5] sm:$0x3] %vm938, %v937
    // Predicated region
    $region14: #{ppnet_forward.1} parent=1 // pred_check
      _
    $region15: #{ppnet_forward.1} parent=1 // pred_check_branch
      %941 = sbr.rel (0) target = $region17
    $region16: #{ppnet_forward.1} parent=1 // pred_region
      %s943 = ssub.s32 32, 32
      %944 = vsyncadd [#allocation4], %s943
      %s946 = sshll.u32 [#allocation5], 4
      %s947 = int_to_ptr.vmem [resolvable:$true] %s946
      %949 = dma.vmem_to_hbm [thread:$0]  %s947, 32, %s2, [#allocation4]
    $region17: #{ppnet_forward.1} parent=1 // pred_fallthru
      _
    // Predicated region
    $region18: #{ppnet_forward.1} parent=1 // pred_check
      _
    $region19: #{ppnet_forward.1} parent=1 // pred_check_branch
      %951 = sbr.rel (0) target = $region21
    $region20: #{ppnet_forward.1} parent=1 // pred_region
      _
    $region21: #{ppnet_forward.1} parent=1 // pred_fallthru
      _
    // Predicated region
    $region22: #{ppnet_forward.1} parent=1 // pred_check
      _
    $region23: #{ppnet_forward.1} parent=1 // pred_check_branch
      %953 = sbr.rel (0) target = $region25
    $region24: #{ppnet_forward.1} parent=1 // pred_region
      %954 = dma.done [#allocation4], 32
    $region25: #{ppnet_forward.1} parent=1 // pred_fallthru
      _
    // Predicated region
    $region26: #{ppnet_forward.1} parent=1 // pred_check
      _
    $region27: #{ppnet_forward.1} parent=1 // pred_check_branch
      %956 = sbr.rel (0) target = $region29
    $region28: #{ppnet_forward.1} parent=1 // pred_region
      _
    $region29: #{ppnet_forward.1} parent=1 // pred_fallthru
      _
    %957 = vsyncpa [#allocation3], 1
    %958 = vsyncpa [#allocation4], 1

</llo_original>
